<compile_context>
chip_gen: v7x
topology: tpu7x:2x2x1
jax: 0.10.0
libtpu: 0.0.40
codegen_flags: <defaults>
</compile_context>

<pallas_src>
import jax
import jax.numpy as jnp
from jax.experimental import pallas as pl
from jax.experimental.pallas import tpu as pltpu

_LANE = 128


def _round_up(n, m):
    return ((n + m - 1) // m) * m


def _mlp_kernel(x_ref,
                w1, b1, w2, b2, w3, b3, w4, b4, w5, b5,
                o_ref):
    """Fused forward: 4x (bf16 matmul + f32 bias/folded-BN + ReLU) + final matmul.

    Dropout(p=0.3) is the identity in eval mode.
    """
    h = x_ref[...].astype(jnp.bfloat16)  # cast in-register, no extra HBM pass
    for w, b in ((w1, b1), (w2, b2), (w3, b3), (w4, b4)):
        acc = jnp.dot(h, w[...], preferred_element_type=jnp.float32) + b[...]
        h = jnp.maximum(acc, 0.0).astype(jnp.bfloat16)
    out = jnp.dot(h, w5[...], preferred_element_type=jnp.float32) + b5[...]
    o_ref[...] = out.astype(o_ref.dtype)  # lane-dense (tile_b, 128) store


def improved_nn_forward(x, kernel_params, *, tile_b=None):
    """x: [B, input_size] float32. kernel_params from fold_and_pack().
    Returns [B, 1] float32."""
    B, input_size = x.shape

    if tile_b is None:
        tile_b = min(1024, _round_up(B, 8))
    tile_b = _round_up(tile_b, 8)
    nb = pl.cdiv(B, tile_b)
    B_pad = nb * tile_b

    if B_pad != B:
        x = jnp.pad(x, ((0, B_pad - B), (0, 0)))

    in_specs = [pl.BlockSpec((tile_b, input_size), lambda i: (i, 0))]
    in_specs += [pl.BlockSpec(p.shape, lambda i: (0, 0)) for p in kernel_params]
    out_spec = pl.BlockSpec((tile_b, _LANE), lambda i: (i, 0))

    flops = 2 * B_pad * sum(int(w.shape[0]) * int(w.shape[1])
                            for w in kernel_params[0::2])
    bytes_accessed = (int(B_pad) * input_size * 4
                      + sum(int(p.size) * p.dtype.itemsize for p in kernel_params)
                      + B_pad * _LANE * 4)

    out = pl.pallas_call(
        _mlp_kernel,
        out_shape=jax.ShapeDtypeStruct((B_pad, _LANE), jnp.float32),
        grid_spec=pltpu.PrefetchScalarGridSpec(
            num_scalar_prefetch=0,
            grid=(nb,),
            in_specs=in_specs,
            out_specs=out_spec,
        ),
        compiler_params=pltpu.CompilerParams(
            dimension_semantics=("parallel",)),
        cost_estimate=pl.CostEstimate(
            flops=flops, transcendentals=0, bytes_accessed=bytes_accessed),
    )(x, *kernel_params)

    return out[:B, :1]


def init_torch_like_params(input_size, key):
    """Deterministic params mirroring ImprovedNN.__init__ (f32, unfolded)."""
    dims = [input_size, 256, 128, 64, 32, 1]
    eps = 1e-5
    keys = jax.random.split(key, len(dims) - 1)
    layers = []
    for li, (din, dout) in enumerate(zip(dims[:-1], dims[1:])):
        kw, kb = jax.random.split(keys[li])
        bound = 1.0 / jnp.sqrt(din)  # PyTorch nn.Linear default init range
        w = jax.random.uniform(kw, (din, dout), jnp.float32, -bound, bound)
        b = jax.random.uniform(kb, (dout,), jnp.float32, -bound, bound)
        if li < 4:  # BN after fc1..fc4 only
            gamma = jnp.ones((dout,), jnp.float32)
            beta = jnp.zeros((dout,), jnp.float32)
            r_mean = jnp.zeros((dout,), jnp.float32)
            r_var = jnp.ones((dout,), jnp.float32)
            layers.append((w, b, gamma, beta, r_mean, r_var, eps))
        else:
            layers.append((w, b))
    return layers


def fold_and_pack(layers, input_size):
    """Fold eval-mode BN into each Linear, zero-pad narrow widths to 128 lanes,
    cast weights to bf16 (biases stay f32 for the f32 accumulator)."""
    kernel_params = []
    prev_out_pad = input_size  # layer-0 input width left unpadded
    for layer in layers:
        if len(layer) == 7:
            w, b, gamma, beta, r_mean, r_var, eps = layer
            scale = gamma / jnp.sqrt(r_var + eps)
            shift = beta - r_mean * scale
            w_f = w * scale[None, :]
            b_f = b * scale + shift
        else:
            w_f, b_f = layer
        din, dout = w_f.shape
        din_pad = prev_out_pad
        dout_pad = _round_up(dout, _LANE)
        w_pad = jnp.zeros((din_pad, dout_pad), jnp.float32).at[:din, :dout].set(w_f)
        b_pad = jnp.zeros((1, dout_pad), jnp.float32).at[:, :dout].set(b_f)
        kernel_params.append(w_pad.astype(jnp.bfloat16))
        kernel_params.append(b_pad)
        prev_out_pad = dout_pad
    return tuple(kernel_params)


def reference_forward(x, layers):
    """Pure-JAX f32 reference (eval mode: BN running stats, dropout identity)."""
    h = x
    for layer in layers:
        if len(layer) == 7:
            w, b, gamma, beta, r_mean, r_var, eps = layer
            h = h @ w + b
            h = (h - r_mean) / jnp.sqrt(r_var + eps) * gamma + beta
            h = jnp.maximum(h, 0.0)
        else:
            w, b = layer
            h = h @ w + b
    return h


if __name__ == "__main__":
    key = jax.random.PRNGKey(0)
    k_x, k_p = jax.random.split(key)

    input_size = 16
    batch = 64
    x = jax.random.normal(k_x, (batch, input_size), jnp.float32)

    layers = init_torch_like_params(input_size, k_p)
    kparams = fold_and_pack(layers, input_size)

    out = improved_nn_forward(x, kparams)
    out = jax.block_until_ready(out)

    ref = reference_forward(x, layers)
    assert out.shape == (batch, 1), out.shape
    max_err = float(jnp.max(jnp.abs(out - ref)))
    assert jnp.allclose(out, ref, atol=3e-2, rtol=3e-2), \
        f"mismatch vs reference (max abs err {max_err})"

    print("KERNEL_OK")
</pallas_src>

<mosaic_0001>
module attributes {stable_mosaic.version = 11 : i64} {
  func.func @_mlp_kernel(%arg0: i32, %arg1: memref<64x16xf32, #tpu.memory_space<vmem>>, %arg2: memref<16x256xbf16, #tpu.memory_space<vmem>>, %arg3: memref<1x256xf32, #tpu.memory_space<vmem>>, %arg4: memref<256x128xbf16, #tpu.memory_space<vmem>>, %arg5: memref<1x128xf32, #tpu.memory_space<vmem>>, %arg6: memref<128x128xbf16, #tpu.memory_space<vmem>>, %arg7: memref<1x128xf32, #tpu.memory_space<vmem>>, %arg8: memref<128x128xbf16, #tpu.memory_space<vmem>>, %arg9: memref<1x128xf32, #tpu.memory_space<vmem>>, %arg10: memref<128x128xbf16, #tpu.memory_space<vmem>>, %arg11: memref<1x128xf32, #tpu.memory_space<vmem>>, %arg12: memref<64x128xf32, #tpu.memory_space<vmem>>) attributes {dimension_semantics = [#tpu.dimension_semantics<parallel>], iteration_bounds = array<i64: 1>, scalar_prefetch = 0 : i64, scratch_operands = 0 : i64, tpu.core_type = #tpu.core_type<tc>, window_params = [{transform_indices = @transform_0, window_bounds = array<i64: 64, 16>}, {pipeline_mode = #tpu.pipeline_mode<synchronous>, transform_indices = @transform_1, window_bounds = array<i64: 16, 256>}, {pipeline_mode = #tpu.pipeline_mode<synchronous>, transform_indices = @transform_2, window_bounds = array<i64: 1, 256>}, {pipeline_mode = #tpu.pipeline_mode<synchronous>, transform_indices = @transform_3, window_bounds = array<i64: 256, 128>}, {pipeline_mode = #tpu.pipeline_mode<synchronous>, transform_indices = @transform_4, window_bounds = array<i64: 1, 128>}, {pipeline_mode = #tpu.pipeline_mode<synchronous>, transform_indices = @transform_5, window_bounds = array<i64: 128, 128>}, {pipeline_mode = #tpu.pipeline_mode<synchronous>, transform_indices = @transform_6, window_bounds = array<i64: 1, 128>}, {pipeline_mode = #tpu.pipeline_mode<synchronous>, transform_indices = @transform_7, window_bounds = array<i64: 128, 128>}, {pipeline_mode = #tpu.pipeline_mode<synchronous>, transform_indices = @transform_8, window_bounds = array<i64: 1, 128>}, {pipeline_mode = #tpu.pipeline_mode<synchronous>, transform_indices = @transform_9, window_bounds = array<i64: 128, 128>}, {pipeline_mode = #tpu.pipeline_mode<synchronous>, transform_indices = @transform_10, window_bounds = array<i64: 1, 128>}, {transform_indices = @transform_11, window_bounds = array<i64: 64, 128>}]} {
    %c0 = arith.constant 0 : index
    %c0_0 = arith.constant 0 : index
    %0 = vector.load %arg1[%c0, %c0_0] : memref<64x16xf32, #tpu.memory_space<vmem>>, vector<64x16xf32>
    %1 = arith.truncf %0 : vector<64x16xf32> to vector<64x16xbf16>
    %c0_1 = arith.constant 0 : index
    %c0_2 = arith.constant 0 : index
    %2 = vector.load %arg2[%c0_1, %c0_2] : memref<16x256xbf16, #tpu.memory_space<vmem>>, vector<16x256xbf16>
    %cst = arith.constant dense<0.000000e+00> : vector<64x256xf32>
    %3 = tpu.matmul %1, %2, %cst {dimension_numbers = #tpu.dot_dimension_numbers<[1], [0], [0], [1], [0, 0, 1, 1], [], []>} : vector<64x16xbf16>, vector<16x256xbf16>, vector<64x256xf32> -> vector<64x256xf32>
    %c0_3 = arith.constant 0 : index
    %c0_4 = arith.constant 0 : index
    %4 = vector.load %arg3[%c0_3, %c0_4] : memref<1x256xf32, #tpu.memory_space<vmem>>, vector<1x256xf32>
    %5 = vector.broadcast %4 : vector<1x256xf32> to vector<64x256xf32>
    %6 = arith.addf %3, %5 : vector<64x256xf32>
    %cst_5 = arith.constant 0.000000e+00 : f32
    %7 = vector.broadcast %cst_5 : f32 to vector<64x256xf32>
    %8 = arith.maximumf %6, %7 : vector<64x256xf32>
    %9 = arith.truncf %8 : vector<64x256xf32> to vector<64x256xbf16>
    %c0_6 = arith.constant 0 : index
    %c0_7 = arith.constant 0 : index
    %10 = vector.load %arg4[%c0_6, %c0_7] : memref<256x128xbf16, #tpu.memory_space<vmem>>, vector<256x128xbf16>
    %cst_8 = arith.constant dense<0.000000e+00> : vector<64x128xf32>
    %11 = tpu.matmul %9, %10, %cst_8 {dimension_numbers = #tpu.dot_dimension_numbers<[1], [0], [0], [1], [0, 0, 1, 1], [], []>} : vector<64x256xbf16>, vector<256x128xbf16>, vector<64x128xf32> -> vector<64x128xf32>
    %c0_9 = arith.constant 0 : index
    %c0_10 = arith.constant 0 : index
    %12 = vector.load %arg5[%c0_9, %c0_10] : memref<1x128xf32, #tpu.memory_space<vmem>>, vector<1x128xf32>
    %13 = vector.broadcast %12 : vector<1x128xf32> to vector<64x128xf32>
    %14 = arith.addf %11, %13 : vector<64x128xf32>
    %cst_11 = arith.constant 0.000000e+00 : f32
    %15 = vector.broadcast %cst_11 : f32 to vector<64x128xf32>
    %16 = arith.maximumf %14, %15 : vector<64x128xf32>
    %17 = arith.truncf %16 : vector<64x128xf32> to vector<64x128xbf16>
    %c0_12 = arith.constant 0 : index
    %c0_13 = arith.constant 0 : index
    %18 = vector.load %arg6[%c0_12, %c0_13] : memref<128x128xbf16, #tpu.memory_space<vmem>>, vector<128x128xbf16>
    %cst_14 = arith.constant dense<0.000000e+00> : vector<64x128xf32>
    %19 = tpu.matmul %17, %18, %cst_14 {dimension_numbers = #tpu.dot_dimension_numbers<[1], [0], [0], [1], [0, 0, 1, 1], [], []>} : vector<64x128xbf16>, vector<128x128xbf16>, vector<64x128xf32> -> vector<64x128xf32>
    %c0_15 = arith.constant 0 : index
    %c0_16 = arith.constant 0 : index
    %20 = vector.load %arg7[%c0_15, %c0_16] : memref<1x128xf32, #tpu.memory_space<vmem>>, vector<1x128xf32>
    %21 = vector.broadcast %20 : vector<1x128xf32> to vector<64x128xf32>
    %22 = arith.addf %19, %21 : vector<64x128xf32>
    %cst_17 = arith.constant 0.000000e+00 : f32
    %23 = vector.broadcast %cst_17 : f32 to vector<64x128xf32>
    %24 = arith.maximumf %22, %23 : vector<64x128xf32>
    %25 = arith.truncf %24 : vector<64x128xf32> to vector<64x128xbf16>
    %c0_18 = arith.constant 0 : index
    %c0_19 = arith.constant 0 : index
    %26 = vector.load %arg8[%c0_18, %c0_19] : memref<128x128xbf16, #tpu.memory_space<vmem>>, vector<128x128xbf16>
    %cst_20 = arith.constant dense<0.000000e+00> : vector<64x128xf32>
    %27 = tpu.matmul %25, %26, %cst_20 {dimension_numbers = #tpu.dot_dimension_numbers<[1], [0], [0], [1], [0, 0, 1, 1], [], []>} : vector<64x128xbf16>, vector<128x128xbf16>, vector<64x128xf32> -> vector<64x128xf32>
    %c0_21 = arith.constant 0 : index
    %c0_22 = arith.constant 0 : index
    %28 = vector.load %arg9[%c0_21, %c0_22] : memref<1x128xf32, #tpu.memory_space<vmem>>, vector<1x128xf32>
    %29 = vector.broadcast %28 : vector<1x128xf32> to vector<64x128xf32>
    %30 = arith.addf %27, %29 : vector<64x128xf32>
    %cst_23 = arith.constant 0.000000e+00 : f32
    %31 = vector.broadcast %cst_23 : f32 to vector<64x128xf32>
    %32 = arith.maximumf %30, %31 : vector<64x128xf32>
    %33 = arith.truncf %32 : vector<64x128xf32> to vector<64x128xbf16>
    %c0_24 = arith.constant 0 : index
    %c0_25 = arith.constant 0 : index
    %34 = vector.load %arg10[%c0_24, %c0_25] : memref<128x128xbf16, #tpu.memory_space<vmem>>, vector<128x128xbf16>
    %cst_26 = arith.constant dense<0.000000e+00> : vector<64x128xf32>
    %35 = tpu.matmul %33, %34, %cst_26 {dimension_numbers = #tpu.dot_dimension_numbers<[1], [0], [0], [1], [0, 0, 1, 1], [], []>} : vector<64x128xbf16>, vector<128x128xbf16>, vector<64x128xf32> -> vector<64x128xf32>
    %c0_27 = arith.constant 0 : index
    %c0_28 = arith.constant 0 : index
    %36 = vector.load %arg11[%c0_27, %c0_28] : memref<1x128xf32, #tpu.memory_space<vmem>>, vector<1x128xf32>
    %37 = vector.broadcast %36 : vector<1x128xf32> to vector<64x128xf32>
    %38 = arith.addf %35, %37 : vector<64x128xf32>
    %c0_29 = arith.constant 0 : index
    %c0_30 = arith.constant 0 : index
    %39 = vector.load %arg12[%c0_29, %c0_30] : memref<64x128xf32, #tpu.memory_space<vmem>>, vector<64x128xf32>
    tpu.vector_store %arg12[%c0_29, %c0_30], %38 {strides = array<i32>} : memref<64x128xf32, #tpu.memory_space<vmem>>, vector<64x128xf32>,
    return
  }
  func.func @transform_0(%arg0: i32) -> (i32, i32) {
    %c0_i32 = arith.constant 0 : i32
    %c0_i32_0 = arith.constant 0 : i32
    return %arg0, %c0_i32 : i32, i32
  }
  func.func @transform_1(%arg0: i32) -> (i32, i32) {
    %c0_i32 = arith.constant 0 : i32
    %c0_i32_0 = arith.constant 0 : i32
    %c0_i32_1 = arith.constant 0 : i32
    return %c0_i32, %c0_i32_0 : i32, i32
  }
  func.func @transform_2(%arg0: i32) -> (i32, i32) {
    %c0_i32 = arith.constant 0 : i32
    %c0_i32_0 = arith.constant 0 : i32
    %c0_i32_1 = arith.constant 0 : i32
    return %c0_i32, %c0_i32_0 : i32, i32
  }
  func.func @transform_3(%arg0: i32) -> (i32, i32) {
    %c0_i32 = arith.constant 0 : i32
    %c0_i32_0 = arith.constant 0 : i32
    %c0_i32_1 = arith.constant 0 : i32
    return %c0_i32, %c0_i32_0 : i32, i32
  }
  func.func @transform_4(%arg0: i32) -> (i32, i32) {
    %c0_i32 = arith.constant 0 : i32
    %c0_i32_0 = arith.constant 0 : i32
    %c0_i32_1 = arith.constant 0 : i32
    return %c0_i32, %c0_i32_0 : i32, i32
  }
  func.func @transform_5(%arg0: i32) -> (i32, i32) {
    %c0_i32 = arith.constant 0 : i32
    %c0_i32_0 = arith.constant 0 : i32
    %c0_i32_1 = arith.constant 0 : i32
    return %c0_i32, %c0_i32_0 : i32, i32
  }
  func.func @transform_6(%arg0: i32) -> (i32, i32) {
    %c0_i32 = arith.constant 0 : i32
    %c0_i32_0 = arith.constant 0 : i32
    %c0_i32_1 = arith.constant 0 : i32
    return %c0_i32, %c0_i32_0 : i32, i32
  }
  func.func @transform_7(%arg0: i32) -> (i32, i32) {
    %c0_i32 = arith.constant 0 : i32
    %c0_i32_0 = arith.constant 0 : i32
    %c0_i32_1 = arith.constant 0 : i32
    return %c0_i32, %c0_i32_0 : i32, i32
  }
  func.func @transform_8(%arg0: i32) -> (i32, i32) {
    %c0_i32 = arith.constant 0 : i32
    %c0_i32_0 = arith.constant 0 : i32
    %c0_i32_1 = arith.constant 0 : i32
    return %c0_i32, %c0_i32_0 : i32, i32
  }
  func.func @transform_9(%arg0: i32) -> (i32, i32) {
    %c0_i32 = arith.constant 0 : i32
    %c0_i32_0 = arith.constant 0 : i32
    %c0_i32_1 = arith.constant 0 : i32
    return %c0_i32, %c0_i32_0 : i32, i32
  }
  func.func @transform_10(%arg0: i32) -> (i32, i32) {
    %c0_i32 = arith.constant 0 : i32
    %c0_i32_0 = arith.constant 0 : i32
    %c0_i32_1 = arith.constant 0 : i32
    return %c0_i32, %c0_i32_0 : i32, i32
  }
  func.func @transform_11(%arg0: i32) -> (i32, i32) {
    %c0_i32 = arith.constant 0 : i32
    %c0_i32_0 = arith.constant 0 : i32
    return %arg0, %c0_i32 : i32, i32
  }
}

</mosaic_0001>

<llo_original>
// kernel: tpu_custom_call.1
$region0: #{tpu_custom_call.1}
  #allocation0 [shape = 'u32[]', space=smem, size = 0x4, offset = 0x4, fixed_abs, tag = 'smem constant byte address 0x4 - core index']
  #allocation1 [shape = 'u32[144,128]{1,0:T(1,128)}', space=vmem, size = 0x12000, scoped, tag = 'internal scratch']
  %s0 = inlined_call_operand.vmem [shape: f32[64,16], index: 0, kind: input, shape index: {}]
  %s1 = inlined_call_operand.vmem [shape: bf16[16,256], index: 1, kind: input, shape index: {}]
  %s2 = inlined_call_operand.vmem [shape: f32[1,256], index: 2, kind: input, shape index: {}]
  %s3 = inlined_call_operand.hbm [shape: bf16[256,128], index: 3, kind: input, shape index: {}]
  %s4 = inlined_call_operand.vmem [shape: f32[1,128], index: 4, kind: input, shape index: {}]
  %s5 = inlined_call_operand.vmem [shape: bf16[128,128], index: 5, kind: input, shape index: {}]
  %s6 = inlined_call_operand.vmem [shape: f32[1,128], index: 6, kind: input, shape index: {}]
  %s7 = inlined_call_operand.hbm [shape: bf16[128,128], index: 7, kind: input, shape index: {}]
  %s8 = inlined_call_operand.vmem [shape: f32[1,128], index: 8, kind: input, shape index: {}]
  %s9 = inlined_call_operand.hbm [shape: bf16[128,128], index: 9, kind: input, shape index: {}]
  %s10 = inlined_call_operand.vmem [shape: f32[1,128], index: 10, kind: input, shape index: {}]
  %s11 = inlined_call_operand.hbm [shape: f32[64,128], index: 11, kind: output, shape index: {}]
  %s12 = sld [smem:[#allocation0]]
  $region66: #{tpu_custom_call.1} parent=0
    _
  %s14 = ssub.s32 1, %s12
  %s15 = scalar_select 0, %s14, %s12
  $region1: #{tpu_custom_call.1} parent=0
    #allocation2 [shape = 'u8[65536]{0}', space=vmem, size = 0x10000, scoped, tag = 'input window, operand 3, single buffered']
    #allocation3 [shape = 's32[1]{0}', space=sflag, size = 0x4, scoped, tag = 'scoped memory for tpu_custom_call.1']
    #allocation4 [shape = 's32[1]{0}', space=sflag, size = 0x4, scoped, tag = 'scoped memory for tpu_custom_call.1']
    #allocation5 [shape = 'u8[32768]{0}', space=vmem, size = 0x8000, scoped, tag = 'input window, operand 7, single buffered']
    #allocation6 [shape = 's32[1]{0}', space=sflag, size = 0x4, scoped, tag = 'scoped memory for tpu_custom_call.1']
    #allocation7 [shape = 'u8[32768]{0}', space=vmem, size = 0x8000, scoped, tag = 'input window, operand 9, single buffered']
    #allocation8 [shape = 'u8[32768]{0}', space=vmem, size = 0x8000, scoped, tag = 'output window, operand 0, single buffered']
    %16 = vsyncpa [#allocation3], 0
    %17 = vsyncpa [#allocation6], 0
    %18 = vsyncpa [#allocation4], 0
    // Predicated region
    $region2: #{tpu_custom_call.1} parent=1 // pred_check
      _
    $region3: #{tpu_custom_call.1} parent=1 // pred_check_branch
      %20 = sbr.rel (0) target = $region5
    $region4: #{tpu_custom_call.1} parent=1 // pred_region
      _
    $region5: #{tpu_custom_call.1} parent=1 // pred_fallthru
      _
    // Predicated region
    $region6: #{tpu_custom_call.1} parent=1 // pred_check
      _
    $region7: #{tpu_custom_call.1} parent=1 // pred_check_branch
      %22 = sbr.rel (0) target = $region9
    $region8: #{tpu_custom_call.1} parent=1 // pred_region
      _
    $region9: #{tpu_custom_call.1} parent=1 // pred_fallthru
      _
    // Predicated region
    $region10: #{tpu_custom_call.1} parent=1 // pred_check
      _
    $region11: #{tpu_custom_call.1} parent=1 // pred_check_branch
      %24 = sbr.rel (0) target = $region13
    $region12: #{tpu_custom_call.1} parent=1 // pred_region
      _
    $region13: #{tpu_custom_call.1} parent=1 // pred_fallthru
      _
    // Predicated region
    $region14: #{tpu_custom_call.1} parent=1 // pred_check
      _
    $region15: #{tpu_custom_call.1} parent=1 // pred_check_branch
      %26 = sbr.rel (0) target = $region17
    $region16: #{tpu_custom_call.1} parent=1 // pred_region
      %s28 = ssub.s32 2048, 2048
      %29 = vsyncadd [#allocation3], %s28
      %s30 = sshll.u32 [#allocation2], 4
      %s31 = int_to_ptr.vmem [resolvable:$true] %s30
      %36 = dma.hbm_to_vmem [thread:$0]  %s3, 2048, %s31, [#allocation3], 64, 64, 4
    $region17: #{tpu_custom_call.1} parent=1 // pred_fallthru
      _
    // Predicated region
    $region18: #{tpu_custom_call.1} parent=1 // pred_check
      _
    $region19: #{tpu_custom_call.1} parent=1 // pred_check_branch
      %38 = sbr.rel (0) target = $region21
    $region20: #{tpu_custom_call.1} parent=1 // pred_region
      _
    $region21: #{tpu_custom_call.1} parent=1 // pred_fallthru
      _
    // Predicated region
    $region22: #{tpu_custom_call.1} parent=1 // pred_check
      _
    $region23: #{tpu_custom_call.1} parent=1 // pred_check_branch
      %40 = sbr.rel (0) target = $region25
    $region24: #{tpu_custom_call.1} parent=1 // pred_region
      _
    $region25: #{tpu_custom_call.1} parent=1 // pred_fallthru
      _
    // Predicated region
    $region26: #{tpu_custom_call.1} parent=1 // pred_check
      _
    $region27: #{tpu_custom_call.1} parent=1 // pred_check_branch
      %42 = sbr.rel (0) target = $region29
    $region28: #{tpu_custom_call.1} parent=1 // pred_region
      _
    $region29: #{tpu_custom_call.1} parent=1 // pred_fallthru
      _
    // Predicated region
    $region30: #{tpu_custom_call.1} parent=1 // pred_check
      _
    $region31: #{tpu_custom_call.1} parent=1 // pred_check_branch
      %44 = sbr.rel (0) target = $region33
    $region32: #{tpu_custom_call.1} parent=1 // pred_region
      %s46 = ssub.s32 1024, 1024
      %47 = vsyncadd [#allocation6], %s46
      %s48 = sshll.u32 [#allocation5], 4
      %s49 = int_to_ptr.vmem [resolvable:$true] %s48
      %54 = dma.hbm_to_vmem [thread:$0]  %s7, 1024, %s49, [#allocation6], 64, 64, 4
    $region33: #{tpu_custom_call.1} parent=1 // pred_fallthru
      _
    // Predicated region
    $region34: #{tpu_custom_call.1} parent=1 // pred_check
      _
    $region35: #{tpu_custom_call.1} parent=1 // pred_check_branch
      %56 = sbr.rel (0) target = $region37
    $region36: #{tpu_custom_call.1} parent=1 // pred_region
      _
    $region37: #{tpu_custom_call.1} parent=1 // pred_fallthru
      _
    // Predicated region
    $region38: #{tpu_custom_call.1} parent=1 // pred_check
      _
    $region39: #{tpu_custom_call.1} parent=1 // pred_check_branch
      %58 = sbr.rel (0) target = $region41
    $region40: #{tpu_custom_call.1} parent=1 // pred_region
      %s60 = ssub.s32 1024, 1024
      %61 = vsyncadd [#allocation6], %s60
      %s62 = sshll.u32 [#allocation7], 4
      %s63 = int_to_ptr.vmem [resolvable:$true] %s62
      %68 = dma.hbm_to_vmem [thread:$0]  %s9, 1024, %s63, [#allocation6], 64, 64, 4
    $region41: #{tpu_custom_call.1} parent=1 // pred_fallthru
      _
    // Predicated region
    $region42: #{tpu_custom_call.1} parent=1 // pred_check
      _
    $region43: #{tpu_custom_call.1} parent=1 // pred_check_branch
      %70 = sbr.rel (0) target = $region45
    $region44: #{tpu_custom_call.1} parent=1 // pred_region
      _
    $region45: #{tpu_custom_call.1} parent=1 // pred_fallthru
      _
    // Predicated region
    $region46: #{tpu_custom_call.1} parent=1 // pred_check
      _
    $region47: #{tpu_custom_call.1} parent=1 // pred_check_branch
      %72 = sbr.rel (0) target = $region49
    $region48: #{tpu_custom_call.1} parent=1 // pred_region
      %73 = dma.done [#allocation3], 2048
    $region49: #{tpu_custom_call.1} parent=1 // pred_fallthru
      _
    // Predicated region
    $region50: #{tpu_custom_call.1} parent=1 // pred_check
      _
    $region51: #{tpu_custom_call.1} parent=1 // pred_check_branch
      %75 = sbr.rel (0) target = $region53
    $region52: #{tpu_custom_call.1} parent=1 // pred_region
      %76 = dma.done [#allocation6], 1024
    $region53: #{tpu_custom_call.1} parent=1 // pred_fallthru
      _
    // Predicated region
    $region54: #{tpu_custom_call.1} parent=1 // pred_check
      _
    $region55: #{tpu_custom_call.1} parent=1 // pred_check_branch
      %78 = sbr.rel (0) target = $region57
    $region56: #{tpu_custom_call.1} parent=1 // pred_region
      %79 = dma.done [#allocation6], 1024
    $region57: #{tpu_custom_call.1} parent=1 // pred_fallthru
      _
    %v81 = vld [vmem:[%s0] sm:$0xff]
    %v82 = vld [vmem:[%s0 + $0x8] sm:$0xff]
    %v83 = vld [vmem:[%s0 + $0x10] sm:$0xff]
    %v84 = vld [vmem:[%s0 + $0x18] sm:$0xff]
    %v85 = vld [vmem:[%s0 + $0x20] sm:$0xff]
    %v86 = vld [vmem:[%s0 + $0x28] sm:$0xff]
    %v87 = vld [vmem:[%s0 + $0x30] sm:$0xff]
    %v88 = vld [vmem:[%s0 + $0x38] sm:$0xff]
    %v89 = vpack.c.bf16 %v82, %v81
    %v90 = vpack.c.bf16 %v84, %v83
    %v91 = vpack.c.bf16 %v86, %v85
    %v92 = vpack.c.bf16 %v88, %v87
    %v93 = vld [vmem:[%s1] sm:$0xff]
    %v94 = vld [vmem:[%s1 + $0x8] sm:$0xff]
    %v95 = vld [vmem:[%s2] sm:$0x3]
    %v97 = vlaneseq
    %v98 = vshrl.u32 %v97, 7
    %v99 = vsub.s32 0, %v98
    %v100 = vrot.slane %v95, %v99
    %v101 = vlaneseq
    %v102 = vshrl.u32 %v101, 7
    %v103 = vsub.s32 1, %v102
    %v104 = vrot.slane %v95, %v103
    %v109 = vunpack.c.l.b16 %v93
    %v110 = vunpack.c.h.b16 %v93
    %v111 = vunpack.c.l.b16 %v94
    %v112 = vunpack.c.h.b16 %v94
    %v113 = vpack.c.b16 %v111, %v109
    %v114 = vpack.c.b16 %v112, %v110
    %vm117 = vcmask 130048
    %v119 = vsel %vm117, %v89, 0
    %v122 = vsel %vm117, %v90, 0
    %v125 = vsel %vm117, %v91, 0
    %v128 = vsel %vm117, %v92, 0
    %130 = vmatprep.subr.bf16.mxu0 %v114
    %131 = vmatpush1.bf16.msra.mxu0 %v113
    %132 = vmatprep.subr.bf16.mxu0 0
    %133 = vmatpush1.bf16.msra.mxu0 0
    %134 = vmatprep.subr.bf16.mxu0 0
    %135 = vmatpush1.bf16.msra.mxu0 0
    %136 = vmatprep.subr.bf16.mxu0 0
    %137 = vmatpush1.bf16.msra.mxu0 0
    %138 = vmatprep.subr.bf16.mxu0 0
    %139 = vmatpush1.bf16.msra.mxu0 0
    %140 = vmatprep.subr.bf16.mxu0 0
    %141 = vmatpush1.bf16.msra.mxu0 0
    %142 = vmatprep.subr.bf16.mxu0 0
    %143 = vmatpush1.bf16.msra.mxu0 0
    %144 = vmatprep.subr.bf16.mxu0 0
    %145 = vmatpush1.bf16.msra.mxu0 0
    %146 = vmatprep.subr.bf16.mxu0 0
    %147 = vmatpush1.bf16.msra.mxu0 0
    %148 = vmatprep.subr.bf16.mxu0 0
    %149 = vmatpush1.bf16.msra.mxu0 0
    %150 = vmatprep.subr.bf16.mxu0 0
    %151 = vmatpush1.bf16.msra.mxu0 0
    %152 = vmatprep.subr.bf16.mxu0 0
    %153 = vmatpush1.bf16.msra.mxu0 0
    %154 = vmatprep.subr.bf16.mxu0 0
    %155 = vmatpush1.bf16.msra.mxu0 0
    %156 = vmatprep.subr.bf16.mxu0 0
    %157 = vmatpush1.bf16.msra.mxu0 0
    %158 = vmatprep.subr.bf16.mxu0 0
    %159 = vmatpush1.bf16.msra.mxu0 0
    %160 = vmatprep.subr.bf16.mxu0 0
    %161 = vmatpush1.bf16.msra.mxu0 0
    %162 = vmatprep.mubr.bf16.mxu0 0
    %163 = vmatmul.mubr.bf16.gmra.mrb[0].mxu0 %v119
    %v164 = vpop.f32.mrb[0].mxu0
    %v165 = vadd.f32 %v100, %v164
    %v166 = vpop.f32.mrb[0].mxu0
    %v167 = vadd.f32 %v104, %v166
    %v168 = vpop.f32.mrb[0].mxu0
    %v169 = vadd.f32 %v100, %v168
    %v170 = vpop.f32.mrb[0].mxu0
    %v171 = vadd.f32 %v104, %v170
    %172 = vmatprep.mubr.bf16.mxu0 0
    %173 = vmatmul.mubr.bf16.gmra.mrb[0].mxu0 %v122
    %v174 = vpop.f32.mrb[0].mxu0
    %v175 = vadd.f32 %v100, %v174
    %v176 = vpop.f32.mrb[0].mxu0
    %v177 = vadd.f32 %v104, %v176
    %v178 = vpop.f32.mrb[0].mxu0
    %v179 = vadd.f32 %v100, %v178
    %v180 = vpop.f32.mrb[0].mxu0
    %v181 = vadd.f32 %v104, %v180
    %182 = vmatprep.mubr.bf16.mxu0 0
    %183 = vmatmul.mubr.bf16.gmra.mrb[0].mxu0 %v125
    %v184 = vpop.f32.mrb[0].mxu0
    %v185 = vadd.f32 %v100, %v184
    %v186 = vpop.f32.mrb[0].mxu0
    %v187 = vadd.f32 %v104, %v186
    %v188 = vpop.f32.mrb[0].mxu0
    %v189 = vadd.f32 %v100, %v188
    %v190 = vpop.f32.mrb[0].mxu0
    %v191 = vadd.f32 %v104, %v190
    %192 = vmatprep.mubr.bf16.mxu0 0
    %193 = vmatmul.mubr.bf16.gmra.mrb[0].mxu0 %v128
    %v194 = vpop.f32.mrb[0].mxu0
    %v195 = vadd.f32 %v100, %v194
    %v196 = vpop.f32.mrb[0].mxu0
    %v197 = vadd.f32 %v104, %v196
    %v198 = vpop.f32.mrb[0].mxu0
    %v199 = vadd.f32 %v100, %v198
    %v200 = vpop.f32.mrb[0].mxu0
    %v201 = vadd.f32 %v104, %v200
    %202 = vdwg.mxu0
    %v203 = vmax.f32 %v165, 0.0
    %v204 = vmax.f32 %v167, 0.0
    %v205 = vmax.f32 %v169, 0.0
    %v206 = vmax.f32 %v171, 0.0
    %v207 = vmax.f32 %v175, 0.0
    %v208 = vmax.f32 %v177, 0.0
    %v209 = vmax.f32 %v179, 0.0
    %v210 = vmax.f32 %v181, 0.0
    %v211 = vmax.f32 %v185, 0.0
    %v212 = vmax.f32 %v187, 0.0
    %v213 = vmax.f32 %v189, 0.0
    %v214 = vmax.f32 %v191, 0.0
    %v215 = vmax.f32 %v195, 0.0
    %v216 = vmax.f32 %v197, 0.0
    %v217 = vmax.f32 %v199, 0.0
    %v218 = vmax.f32 %v201, 0.0
    %v219 = vpack.c.bf16 %v205, %v203
    %v220 = vpack.c.bf16 %v206, %v204
    %v221 = vpack.c.bf16 %v209, %v207
    %v222 = vpack.c.bf16 %v210, %v208
    %v223 = vpack.c.bf16 %v213, %v211
    %v224 = vpack.c.bf16 %v214, %v212
    %v225 = vpack.c.bf16 %v217, %v215
    %v226 = vpack.c.bf16 %v218, %v216
    %v227 = vld [vmem:[#allocation2] sm:$0xf]
    %v228 = vld [vmem:[#allocation2 + $0x4] sm:$0xf]
    %v229 = vld [vmem:[#allocation2 + $0x8] sm:$0xf]
    %v230 = vld [vmem:[#allocation2 + $0xc] sm:$0xf]
    %v231 = vld [vmem:[#allocation2 + $0x10] sm:$0xf]
    %v232 = vld [vmem:[#allocation2 + $0x14] sm:$0xf]
    %v233 = vld [vmem:[#allocation2 + $0x18] sm:$0xf]
    %v234 = vld [vmem:[#allocation2 + $0x1c] sm:$0xf]
    %v235 = vld [vmem:[#allocation2 + $0x20] sm:$0xf]
    %v236 = vld [vmem:[#allocation2 + $0x24] sm:$0xf]
    %v237 = vld [vmem:[#allocation2 + $0x28] sm:$0xf]
    %v238 = vld [vmem:[#allocation2 + $0x2c] sm:$0xf]
    %v239 = vld [vmem:[#allocation2 + $0x30] sm:$0xf]
    %v240 = vld [vmem:[#allocation2 + $0x34] sm:$0xf]
    %v241 = vld [vmem:[#allocation2 + $0x38] sm:$0xf]
    %v242 = vld [vmem:[#allocation2 + $0x3c] sm:$0xf]
    %v243 = vld [vmem:[#allocation2 + $0x40] sm:$0xf]
    %v244 = vld [vmem:[#allocation2 + $0x44] sm:$0xf]
    %v245 = vld [vmem:[#allocation2 + $0x48] sm:$0xf]
    %v246 = vld [vmem:[#allocation2 + $0x4c] sm:$0xf]
    %v247 = vld [vmem:[#allocation2 + $0x50] sm:$0xf]
    %v248 = vld [vmem:[#allocation2 + $0x54] sm:$0xf]
    %v249 = vld [vmem:[#allocation2 + $0x58] sm:$0xf]
    %v250 = vld [vmem:[#allocation2 + $0x5c] sm:$0xf]
    %v251 = vld [vmem:[#allocation2 + $0x60] sm:$0xf]
    %v252 = vld [vmem:[#allocation2 + $0x64] sm:$0xf]
    %v253 = vld [vmem:[#allocation2 + $0x68] sm:$0xf]
    %v254 = vld [vmem:[#allocation2 + $0x6c] sm:$0xf]
    %v255 = vld [vmem:[#allocation2 + $0x70] sm:$0xf]
    %v256 = vld [vmem:[#allocation2 + $0x74] sm:$0xf]
    %v257 = vld [vmem:[#allocation2 + $0x78] sm:$0xf]
    %v258 = vld [vmem:[#allocation2 + $0x7c] sm:$0xf]
    %v259 = vld [vmem:[%s4] sm:$0x1]
    %v261 = vlaneseq
    %v262 = vshrl.u32 %v261, 7
    %v263 = vsub.s32 0, %v262
    %v264 = vrot.slane %v259, %v263
    %v298 = vunpack.c.l.b16 %v227
    %v299 = vunpack.c.l.b16 %v228
    %v300 = vunpack.c.l.b16 %v229
    %v301 = vunpack.c.l.b16 %v230
    %v302 = vunpack.c.l.b16 %v231
    %v303 = vunpack.c.l.b16 %v232
    %v304 = vunpack.c.l.b16 %v233
    %v305 = vunpack.c.l.b16 %v234
    %v306 = vunpack.c.l.b16 %v235
    %v307 = vunpack.c.l.b16 %v236
    %v308 = vunpack.c.l.b16 %v237
    %v309 = vunpack.c.l.b16 %v238
    %v310 = vunpack.c.l.b16 %v239
    %v311 = vunpack.c.l.b16 %v240
    %v312 = vunpack.c.l.b16 %v241
    %v313 = vunpack.c.l.b16 %v242
    %v314 = vunpack.c.l.b16 %v243
    %v315 = vunpack.c.l.b16 %v244
    %v316 = vunpack.c.l.b16 %v245
    %v317 = vunpack.c.l.b16 %v246
    %v318 = vunpack.c.l.b16 %v247
    %v319 = vunpack.c.l.b16 %v248
    %v320 = vunpack.c.l.b16 %v249
    %v321 = vunpack.c.l.b16 %v250
    %v322 = vunpack.c.l.b16 %v251
    %v323 = vunpack.c.l.b16 %v252
    %v324 = vunpack.c.l.b16 %v253
    %v325 = vunpack.c.l.b16 %v254
    %v326 = vunpack.c.l.b16 %v255
    %v327 = vunpack.c.l.b16 %v256
    %v328 = vunpack.c.l.b16 %v257
    %v329 = vunpack.c.l.b16 %v258
    %v330 = vpack.c.b16 %v299, %v298
    %v331 = vpack.c.b16 %v301, %v300
    %v332 = vpack.c.b16 %v303, %v302
    %v333 = vpack.c.b16 %v305, %v304
    %v334 = vpack.c.b16 %v307, %v306
    %v335 = vpack.c.b16 %v309, %v308
    %v336 = vpack.c.b16 %v311, %v310
    %v337 = vpack.c.b16 %v313, %v312
    %v338 = vpack.c.b16 %v315, %v314
    %v339 = vpack.c.b16 %v317, %v316
    %v340 = vpack.c.b16 %v319, %v318
    %v341 = vpack.c.b16 %v321, %v320
    %v342 = vpack.c.b16 %v323, %v322
    %v343 = vpack.c.b16 %v325, %v324
    %v344 = vpack.c.b16 %v327, %v326
    %v345 = vpack.c.b16 %v329, %v328
    %362 = vmatprep.subr.bf16.mxu0 0
    %363 = vmatpush1.bf16.msra.mxu0 %v330
    %364 = vmatprep.subr.bf16.mxu0 0
    %365 = vmatpush1.bf16.msra.mxu0 %v331
    %366 = vmatprep.subr.bf16.mxu0 0
    %367 = vmatpush1.bf16.msra.mxu0 %v332
    %368 = vmatprep.subr.bf16.mxu0 0
    %369 = vmatpush1.bf16.msra.mxu0 %v333
    %370 = vmatprep.subr.bf16.mxu0 0
    %371 = vmatpush1.bf16.msra.mxu0 %v334
    %372 = vmatprep.subr.bf16.mxu0 0
    %373 = vmatpush1.bf16.msra.mxu0 %v335
    %374 = vmatprep.subr.bf16.mxu0 0
    %375 = vmatpush1.bf16.msra.mxu0 %v336
    %376 = vmatprep.subr.bf16.mxu0 0
    %377 = vmatpush1.bf16.msra.mxu0 %v337
    %378 = vmatprep.subr.bf16.mxu0 0
    %379 = vmatpush1.bf16.msra.mxu0 %v338
    %380 = vmatprep.subr.bf16.mxu0 0
    %381 = vmatpush1.bf16.msra.mxu0 %v339
    %382 = vmatprep.subr.bf16.mxu0 0
    %383 = vmatpush1.bf16.msra.mxu0 %v340
    %384 = vmatprep.subr.bf16.mxu0 0
    %385 = vmatpush1.bf16.msra.mxu0 %v341
    %386 = vmatprep.subr.bf16.mxu0 0
    %387 = vmatpush1.bf16.msra.mxu0 %v342
    %388 = vmatprep.subr.bf16.mxu0 0
    %389 = vmatpush1.bf16.msra.mxu0 %v343
    %390 = vmatprep.subr.bf16.mxu0 0
    %391 = vmatpush1.bf16.msra.mxu0 %v344
    %392 = vmatprep.subr.bf16.mxu0 0
    %393 = vmatpush1.bf16.msra.mxu0 %v345
    %394 = vmatprep.mubr.bf16.mxu0 %v220
    %395 = vmatmul.mubr.bf16.gmra.mrb[0].mxu0 %v219
    %v396 = vpop.f32.mrb[0].mxu0
    %v397 = vadd.f32 %v264, %v396
    %v398 = vpop.f32.mrb[0].mxu0
    %v399 = vpop.f32.mrb[0].mxu0
    %v400 = vadd.f32 %v264, %v399
    %v401 = vpop.f32.mrb[0].mxu0
    %402 = vmatprep.mubr.bf16.mxu0 %v222
    %403 = vmatmul.mubr.bf16.gmra.mrb[0].mxu0 %v221
    %v404 = vpop.f32.mrb[0].mxu0
    %v405 = vadd.f32 %v264, %v404
    %v406 = vpop.f32.mrb[0].mxu0
    %v407 = vpop.f32.mrb[0].mxu0
    %v408 = vadd.f32 %v264, %v407
    %v409 = vpop.f32.mrb[0].mxu0
    %410 = vmatprep.mubr.bf16.mxu0 %v224
    %411 = vmatmul.mubr.bf16.gmra.mrb[0].mxu0 %v223
    %v412 = vpop.f32.mrb[0].mxu0
    %v413 = vadd.f32 %v264, %v412
    %v414 = vpop.f32.mrb[0].mxu0
    %v415 = vpop.f32.mrb[0].mxu0
    %v416 = vadd.f32 %v264, %v415
    %v417 = vpop.f32.mrb[0].mxu0
    %418 = vmatprep.mubr.bf16.mxu0 %v226
    %419 = vmatmul.mubr.bf16.gmra.mrb[0].mxu0 %v225
    %v420 = vpop.f32.mrb[0].mxu0
    %v421 = vadd.f32 %v264, %v420
    %v422 = vpop.f32.mrb[0].mxu0
    %v423 = vpop.f32.mrb[0].mxu0
    %v424 = vadd.f32 %v264, %v423
    %v425 = vpop.f32.mrb[0].mxu0
    %426 = vdwg.mxu0
    %v427 = vmax.f32 %v397, 0.0
    %v428 = vmax.f32 %v400, 0.0
    %v429 = vmax.f32 %v405, 0.0
    %v430 = vmax.f32 %v408, 0.0
    %v431 = vmax.f32 %v413, 0.0
    %v432 = vmax.f32 %v416, 0.0
    %v433 = vmax.f32 %v421, 0.0
    %v434 = vmax.f32 %v424, 0.0
    %v435 = vpack.c.bf16 %v428, %v427
    %v436 = vpack.c.bf16 %v430, %v429
    %v437 = vpack.c.bf16 %v432, %v431
    %v438 = vpack.c.bf16 %v434, %v433
    %v439 = vld [vmem:[%s5] sm:$0xf]
    %v440 = vld [vmem:[%s5 + $0x4] sm:$0xf]
    %v441 = vld [vmem:[%s5 + $0x8] sm:$0xf]
    %v442 = vld [vmem:[%s5 + $0xc] sm:$0xf]
    %v443 = vld [vmem:[%s5 + $0x10] sm:$0xf]
    %v444 = vld [vmem:[%s5 + $0x14] sm:$0xf]
    %v445 = vld [vmem:[%s5 + $0x18] sm:$0xf]
    %v446 = vld [vmem:[%s5 + $0x1c] sm:$0xf]
    %v447 = vld [vmem:[%s5 + $0x20] sm:$0xf]
    %v448 = vld [vmem:[%s5 + $0x24] sm:$0xf]
    %v449 = vld [vmem:[%s5 + $0x28] sm:$0xf]
    %v450 = vld [vmem:[%s5 + $0x2c] sm:$0xf]
    %v451 = vld [vmem:[%s5 + $0x30] sm:$0xf]
    %v452 = vld [vmem:[%s5 + $0x34] sm:$0xf]
    %v453 = vld [vmem:[%s5 + $0x38] sm:$0xf]
    %v454 = vld [vmem:[%s5 + $0x3c] sm:$0xf]
    %v455 = vld [vmem:[%s6] sm:$0x1]
    %v457 = vlaneseq
    %v458 = vshrl.u32 %v457, 7
    %v459 = vsub.s32 0, %v458
    %v460 = vrot.slane %v455, %v459
    %v478 = vunpack.c.l.b16 %v439
    %v479 = vunpack.c.l.b16 %v440
    %v480 = vunpack.c.l.b16 %v441
    %v481 = vunpack.c.l.b16 %v442
    %v482 = vunpack.c.l.b16 %v443
    %v483 = vunpack.c.l.b16 %v444
    %v484 = vunpack.c.l.b16 %v445
    %v485 = vunpack.c.l.b16 %v446
    %v486 = vunpack.c.l.b16 %v447
    %v487 = vunpack.c.l.b16 %v448
    %v488 = vunpack.c.l.b16 %v449
    %v489 = vunpack.c.l.b16 %v450
    %v490 = vunpack.c.l.b16 %v451
    %v491 = vunpack.c.l.b16 %v452
    %v492 = vunpack.c.l.b16 %v453
    %v493 = vunpack.c.l.b16 %v454
    %v494 = vpack.c.b16 %v479, %v478
    %v495 = vpack.c.b16 %v481, %v480
    %v496 = vpack.c.b16 %v483, %v482
    %v497 = vpack.c.b16 %v485, %v484
    %v498 = vpack.c.b16 %v487, %v486
    %v499 = vpack.c.b16 %v489, %v488
    %v500 = vpack.c.b16 %v491, %v490
    %v501 = vpack.c.b16 %v493, %v492
    %510 = vmatprep.subr.bf16.mxu0 0
    %511 = vmatpush1.bf16.msra.mxu0 %v494
    %512 = vmatprep.subr.bf16.mxu0 0
    %513 = vmatpush1.bf16.msra.mxu0 %v495
    %514 = vmatprep.subr.bf16.mxu0 0
    %515 = vmatpush1.bf16.msra.mxu0 %v496
    %516 = vmatprep.subr.bf16.mxu0 0
    %517 = vmatpush1.bf16.msra.mxu0 %v497
    %518 = vmatprep.subr.bf16.mxu0 0
    %519 = vmatpush1.bf16.msra.mxu0 %v498
    %520 = vmatprep.subr.bf16.mxu0 0
    %521 = vmatpush1.bf16.msra.mxu0 %v499
    %522 = vmatprep.subr.bf16.mxu0 0
    %523 = vmatpush1.bf16.msra.mxu0 %v500
    %524 = vmatprep.subr.bf16.mxu0 0
    %525 = vmatpush1.bf16.msra.mxu0 %v501
    %526 = vmatprep.subr.bf16.mxu0 0
    %527 = vmatpush1.bf16.msra.mxu0 0
    %528 = vmatprep.subr.bf16.mxu0 0
    %529 = vmatpush1.bf16.msra.mxu0 0
    %530 = vmatprep.subr.bf16.mxu0 0
    %531 = vmatpush1.bf16.msra.mxu0 0
    %532 = vmatprep.subr.bf16.mxu0 0
    %533 = vmatpush1.bf16.msra.mxu0 0
    %534 = vmatprep.subr.bf16.mxu0 0
    %535 = vmatpush1.bf16.msra.mxu0 0
    %536 = vmatprep.subr.bf16.mxu0 0
    %537 = vmatpush1.bf16.msra.mxu0 0
    %538 = vmatprep.subr.bf16.mxu0 0
    %539 = vmatpush1.bf16.msra.mxu0 0
    %540 = vmatprep.subr.bf16.mxu0 0
    %541 = vmatpush1.bf16.msra.mxu0 0
    %542 = vmatprep.mubr.bf16.mxu0 0
    %543 = vmatmul.mubr.bf16.gmra.mrb[0].mxu0 %v435
    %v544 = vpop.f32.mrb[0].mxu0
    %v545 = vadd.f32 %v460, %v544
    %v546 = vpop.f32.mrb[0].mxu0
    %v547 = vpop.f32.mrb[0].mxu0
    %v548 = vadd.f32 %v460, %v547
    %v549 = vpop.f32.mrb[0].mxu0
    %550 = vmatprep.mubr.bf16.mxu0 0
    %551 = vmatmul.mubr.bf16.gmra.mrb[0].mxu0 %v436
    %v552 = vpop.f32.mrb[0].mxu0
    %v553 = vadd.f32 %v460, %v552
    %v554 = vpop.f32.mrb[0].mxu0
    %v555 = vpop.f32.mrb[0].mxu0
    %v556 = vadd.f32 %v460, %v555
    %v557 = vpop.f32.mrb[0].mxu0
    %558 = vmatprep.mubr.bf16.mxu0 0
    %559 = vmatmul.mubr.bf16.gmra.mrb[0].mxu0 %v437
    %v560 = vpop.f32.mrb[0].mxu0
    %v561 = vadd.f32 %v460, %v560
    %v562 = vpop.f32.mrb[0].mxu0
    %v563 = vpop.f32.mrb[0].mxu0
    %v564 = vadd.f32 %v460, %v563
    %v565 = vpop.f32.mrb[0].mxu0
    %566 = vmatprep.mubr.bf16.mxu0 0
    %567 = vmatmul.mubr.bf16.gmra.mrb[0].mxu0 %v438
    %v568 = vpop.f32.mrb[0].mxu0
    %v569 = vadd.f32 %v460, %v568
    %v570 = vpop.f32.mrb[0].mxu0
    %v571 = vpop.f32.mrb[0].mxu0
    %v572 = vadd.f32 %v460, %v571
    %v573 = vpop.f32.mrb[0].mxu0
    %574 = vdwg.mxu0
    %v575 = vmax.f32 %v545, 0.0
    %v576 = vmax.f32 %v548, 0.0
    %v577 = vmax.f32 %v553, 0.0
    %v578 = vmax.f32 %v556, 0.0
    %v579 = vmax.f32 %v561, 0.0
    %v580 = vmax.f32 %v564, 0.0
    %v581 = vmax.f32 %v569, 0.0
    %v582 = vmax.f32 %v572, 0.0
    %v583 = vpack.c.bf16 %v576, %v575
    %v584 = vpack.c.bf16 %v578, %v577
    %v585 = vpack.c.bf16 %v580, %v579
    %v586 = vpack.c.bf16 %v582, %v581
    %v587 = vld [vmem:[#allocation5] sm:$0xf]
    %v588 = vld [vmem:[#allocation5 + $0x4] sm:$0xf]
    %v589 = vld [vmem:[#allocation5 + $0x8] sm:$0xf]
    %v590 = vld [vmem:[#allocation5 + $0xc] sm:$0xf]
    %v591 = vld [vmem:[#allocation5 + $0x10] sm:$0xf]
    %v592 = vld [vmem:[#allocation5 + $0x14] sm:$0xf]
    %v593 = vld [vmem:[#allocation5 + $0x18] sm:$0xf]
    %v594 = vld [vmem:[#allocation5 + $0x1c] sm:$0xf]
    %v595 = vld [vmem:[#allocation5 + $0x20] sm:$0xf]
    %v596 = vld [vmem:[#allocation5 + $0x24] sm:$0xf]
    %v597 = vld [vmem:[#allocation5 + $0x28] sm:$0xf]
    %v598 = vld [vmem:[#allocation5 + $0x2c] sm:$0xf]
    %v599 = vld [vmem:[#allocation5 + $0x30] sm:$0xf]
    %v600 = vld [vmem:[#allocation5 + $0x34] sm:$0xf]
    %v601 = vld [vmem:[#allocation5 + $0x38] sm:$0xf]
    %v602 = vld [vmem:[#allocation5 + $0x3c] sm:$0xf]
    %v603 = vld [vmem:[%s8] sm:$0x1]
    %v605 = vlaneseq
    %v606 = vshrl.u32 %v605, 7
    %v607 = vsub.s32 0, %v606
    %v608 = vrot.slane %v603, %v607
    %v626 = vunpack.c.l.b16 %v587
    %v627 = vunpack.c.l.b16 %v588
    %v628 = vunpack.c.l.b16 %v589
    %v629 = vunpack.c.l.b16 %v590
    %v630 = vunpack.c.l.b16 %v591
    %v631 = vunpack.c.l.b16 %v592
    %v632 = vunpack.c.l.b16 %v593
    %v633 = vunpack.c.l.b16 %v594
    %v634 = vunpack.c.l.b16 %v595
    %v635 = vunpack.c.l.b16 %v596
    %v636 = vunpack.c.l.b16 %v597
    %v637 = vunpack.c.l.b16 %v598
    %v638 = vunpack.c.l.b16 %v599
    %v639 = vunpack.c.l.b16 %v600
    %v640 = vunpack.c.l.b16 %v601
    %v641 = vunpack.c.l.b16 %v602
    %v642 = vpack.c.b16 %v627, %v626
    %v643 = vpack.c.b16 %v629, %v628
    %v644 = vpack.c.b16 %v631, %v630
    %v645 = vpack.c.b16 %v633, %v632
    %v646 = vpack.c.b16 %v635, %v634
    %v647 = vpack.c.b16 %v637, %v636
    %v648 = vpack.c.b16 %v639, %v638
    %v649 = vpack.c.b16 %v641, %v640
    %658 = vmatprep.subr.bf16.mxu0 0
    %659 = vmatpush1.bf16.msra.mxu0 %v642
    %660 = vmatprep.subr.bf16.mxu0 0
    %661 = vmatpush1.bf16.msra.mxu0 %v643
    %662 = vmatprep.subr.bf16.mxu0 0
    %663 = vmatpush1.bf16.msra.mxu0 %v644
    %664 = vmatprep.subr.bf16.mxu0 0
    %665 = vmatpush1.bf16.msra.mxu0 %v645
    %666 = vmatprep.subr.bf16.mxu0 0
    %667 = vmatpush1.bf16.msra.mxu0 %v646
    %668 = vmatprep.subr.bf16.mxu0 0
    %669 = vmatpush1.bf16.msra.mxu0 %v647
    %670 = vmatprep.subr.bf16.mxu0 0
    %671 = vmatpush1.bf16.msra.mxu0 %v648
    %672 = vmatprep.subr.bf16.mxu0 0
    %673 = vmatpush1.bf16.msra.mxu0 %v649
    %674 = vmatprep.subr.bf16.mxu0 0
    %675 = vmatpush1.bf16.msra.mxu0 0
    %676 = vmatprep.subr.bf16.mxu0 0
    %677 = vmatpush1.bf16.msra.mxu0 0
    %678 = vmatprep.subr.bf16.mxu0 0
    %679 = vmatpush1.bf16.msra.mxu0 0
    %680 = vmatprep.subr.bf16.mxu0 0
    %681 = vmatpush1.bf16.msra.mxu0 0
    %682 = vmatprep.subr.bf16.mxu0 0
    %683 = vmatpush1.bf16.msra.mxu0 0
    %684 = vmatprep.subr.bf16.mxu0 0
    %685 = vmatpush1.bf16.msra.mxu0 0
    %686 = vmatprep.subr.bf16.mxu0 0
    %687 = vmatpush1.bf16.msra.mxu0 0
    %688 = vmatprep.subr.bf16.mxu0 0
    %689 = vmatpush1.bf16.msra.mxu0 0
    %690 = vmatprep.mubr.bf16.mxu0 0
    %691 = vmatmul.mubr.bf16.gmra.mrb[0].mxu0 %v583
    %v692 = vpop.f32.mrb[0].mxu0
    %v693 = vadd.f32 %v608, %v692
    %v694 = vpop.f32.mrb[0].mxu0
    %v695 = vpop.f32.mrb[0].mxu0
    %v696 = vadd.f32 %v608, %v695
    %v697 = vpop.f32.mrb[0].mxu0
    %698 = vmatprep.mubr.bf16.mxu0 0
    %699 = vmatmul.mubr.bf16.gmra.mrb[0].mxu0 %v584
    %v700 = vpop.f32.mrb[0].mxu0
    %v701 = vadd.f32 %v608, %v700
    %v702 = vpop.f32.mrb[0].mxu0
    %v703 = vpop.f32.mrb[0].mxu0
    %v704 = vadd.f32 %v608, %v703
    %v705 = vpop.f32.mrb[0].mxu0
    %706 = vmatprep.mubr.bf16.mxu0 0
    %707 = vmatmul.mubr.bf16.gmra.mrb[0].mxu0 %v585
    %v708 = vpop.f32.mrb[0].mxu0
    %v709 = vadd.f32 %v608, %v708
    %v710 = vpop.f32.mrb[0].mxu0
    %v711 = vpop.f32.mrb[0].mxu0
    %v712 = vadd.f32 %v608, %v711
    %v713 = vpop.f32.mrb[0].mxu0
    %714 = vmatprep.mubr.bf16.mxu0 0
    %715 = vmatmul.mubr.bf16.gmra.mrb[0].mxu0 %v586
    %v716 = vpop.f32.mrb[0].mxu0
    %v717 = vadd.f32 %v608, %v716
    %v718 = vpop.f32.mrb[0].mxu0
    %v719 = vpop.f32.mrb[0].mxu0
    %v720 = vadd.f32 %v608, %v719
    %v721 = vpop.f32.mrb[0].mxu0
    %722 = vdwg.mxu0
    %v723 = vmax.f32 %v693, 0.0
    %v724 = vmax.f32 %v696, 0.0
    %v725 = vmax.f32 %v701, 0.0
    %v726 = vmax.f32 %v704, 0.0
    %v727 = vmax.f32 %v709, 0.0
    %v728 = vmax.f32 %v712, 0.0
    %v729 = vmax.f32 %v717, 0.0
    %v730 = vmax.f32 %v720, 0.0
    %v731 = vpack.c.bf16 %v724, %v723
    %v732 = vpack.c.bf16 %v726, %v725
    %v733 = vpack.c.bf16 %v728, %v727
    %v734 = vpack.c.bf16 %v730, %v729
    %v735 = vld [vmem:[#allocation7] sm:$0xf]
    %v736 = vld [vmem:[#allocation7 + $0x4] sm:$0xf]
    %v737 = vld [vmem:[#allocation7 + $0x8] sm:$0xf]
    %v738 = vld [vmem:[#allocation7 + $0xc] sm:$0xf]
    %v739 = vld [vmem:[#allocation7 + $0x10] sm:$0xf]
    %v740 = vld [vmem:[#allocation7 + $0x14] sm:$0xf]
    %v741 = vld [vmem:[#allocation7 + $0x18] sm:$0xf]
    %v742 = vld [vmem:[#allocation7 + $0x1c] sm:$0xf]
    %v743 = vld [vmem:[#allocation7 + $0x20] sm:$0xf]
    %v744 = vld [vmem:[#allocation7 + $0x24] sm:$0xf]
    %v745 = vld [vmem:[#allocation7 + $0x28] sm:$0xf]
    %v746 = vld [vmem:[#allocation7 + $0x2c] sm:$0xf]
    %v747 = vld [vmem:[#allocation7 + $0x30] sm:$0xf]
    %v748 = vld [vmem:[#allocation7 + $0x34] sm:$0xf]
    %v749 = vld [vmem:[#allocation7 + $0x38] sm:$0xf]
    %v750 = vld [vmem:[#allocation7 + $0x3c] sm:$0xf]
    %v751 = vld [vmem:[%s10] sm:$0x1]
    %v753 = vlaneseq
    %v754 = vshrl.u32 %v753, 7
    %v755 = vsub.s32 0, %v754
    %v756 = vrot.slane %v751, %v755
    %v774 = vunpack.c.l.b16 %v735
    %v775 = vunpack.c.l.b16 %v736
    %v776 = vunpack.c.l.b16 %v737
    %v777 = vunpack.c.l.b16 %v738
    %v778 = vunpack.c.l.b16 %v739
    %v779 = vunpack.c.l.b16 %v740
    %v780 = vunpack.c.l.b16 %v741
    %v781 = vunpack.c.l.b16 %v742
    %v782 = vunpack.c.l.b16 %v743
    %v783 = vunpack.c.l.b16 %v744
    %v784 = vunpack.c.l.b16 %v745
    %v785 = vunpack.c.l.b16 %v746
    %v786 = vunpack.c.l.b16 %v747
    %v787 = vunpack.c.l.b16 %v748
    %v788 = vunpack.c.l.b16 %v749
    %v789 = vunpack.c.l.b16 %v750
    %v790 = vpack.c.b16 %v775, %v774
    %v791 = vpack.c.b16 %v777, %v776
    %v792 = vpack.c.b16 %v779, %v778
    %v793 = vpack.c.b16 %v781, %v780
    %v794 = vpack.c.b16 %v783, %v782
    %v795 = vpack.c.b16 %v785, %v784
    %v796 = vpack.c.b16 %v787, %v786
    %v797 = vpack.c.b16 %v789, %v788
    %806 = vmatprep.subr.bf16.mxu0 0
    %807 = vmatpush1.bf16.msra.mxu0 %v790
    %808 = vmatprep.subr.bf16.mxu0 0
    %809 = vmatpush1.bf16.msra.mxu0 %v791
    %810 = vmatprep.subr.bf16.mxu0 0
    %811 = vmatpush1.bf16.msra.mxu0 %v792
    %812 = vmatprep.subr.bf16.mxu0 0
    %813 = vmatpush1.bf16.msra.mxu0 %v793
    %814 = vmatprep.subr.bf16.mxu0 0
    %815 = vmatpush1.bf16.msra.mxu0 %v794
    %816 = vmatprep.subr.bf16.mxu0 0
    %817 = vmatpush1.bf16.msra.mxu0 %v795
    %818 = vmatprep.subr.bf16.mxu0 0
    %819 = vmatpush1.bf16.msra.mxu0 %v796
    %820 = vmatprep.subr.bf16.mxu0 0
    %821 = vmatpush1.bf16.msra.mxu0 %v797
    %822 = vmatprep.subr.bf16.mxu0 0
    %823 = vmatpush1.bf16.msra.mxu0 0
    %824 = vmatprep.subr.bf16.mxu0 0
    %825 = vmatpush1.bf16.msra.mxu0 0
    %826 = vmatprep.subr.bf16.mxu0 0
    %827 = vmatpush1.bf16.msra.mxu0 0
    %828 = vmatprep.subr.bf16.mxu0 0
    %829 = vmatpush1.bf16.msra.mxu0 0
    %830 = vmatprep.subr.bf16.mxu0 0
    %831 = vmatpush1.bf16.msra.mxu0 0
    %832 = vmatprep.subr.bf16.mxu0 0
    %833 = vmatpush1.bf16.msra.mxu0 0
    %834 = vmatprep.subr.bf16.mxu0 0
    %835 = vmatpush1.bf16.msra.mxu0 0
    %836 = vmatprep.subr.bf16.mxu0 0
    %837 = vmatpush1.bf16.msra.mxu0 0
    %838 = vmatprep.mubr.bf16.mxu0 0
    %839 = vmatmul.mubr.bf16.gmra.mrb[0].mxu0 %v731
    %v840 = vpop.f32.mrb[0].mxu0
    %v841 = vadd.f32 %v756, %v840
    %v842 = vpop.f32.mrb[0].mxu0
    %v843 = vpop.f32.mrb[0].mxu0
    %v844 = vadd.f32 %v756, %v843
    %v845 = vpop.f32.mrb[0].mxu0
    %846 = vmatprep.mubr.bf16.mxu0 0
    %847 = vmatmul.mubr.bf16.gmra.mrb[0].mxu0 %v732
    %v848 = vpop.f32.mrb[0].mxu0
    %v849 = vadd.f32 %v756, %v848
    %v850 = vpop.f32.mrb[0].mxu0
    %v851 = vpop.f32.mrb[0].mxu0
    %v852 = vadd.f32 %v756, %v851
    %v853 = vpop.f32.mrb[0].mxu0
    %854 = vmatprep.mubr.bf16.mxu0 0
    %855 = vmatmul.mubr.bf16.gmra.mrb[0].mxu0 %v733
    %v856 = vpop.f32.mrb[0].mxu0
    %v857 = vadd.f32 %v756, %v856
    %v858 = vpop.f32.mrb[0].mxu0
    %v859 = vpop.f32.mrb[0].mxu0
    %v860 = vadd.f32 %v756, %v859
    %v861 = vpop.f32.mrb[0].mxu0
    %862 = vmatprep.mubr.bf16.mxu0 0
    %863 = vmatmul.mubr.bf16.gmra.mrb[0].mxu0 %v734
    %v864 = vpop.f32.mrb[0].mxu0
    %v865 = vadd.f32 %v756, %v864
    %v866 = vpop.f32.mrb[0].mxu0
    %v867 = vpop.f32.mrb[0].mxu0
    %v868 = vadd.f32 %v756, %v867
    %v869 = vpop.f32.mrb[0].mxu0
    %870 = vdwg.mxu0
    %871 = vst [vmem:[#allocation8] sm:$0xff] %v841
    %872 = vst [vmem:[#allocation8 + $0x8] sm:$0xff] %v844
    %873 = vst [vmem:[#allocation8 + $0x10] sm:$0xff] %v849
    %874 = vst [vmem:[#allocation8 + $0x18] sm:$0xff] %v852
    %875 = vst [vmem:[#allocation8 + $0x20] sm:$0xff] %v857
    %876 = vst [vmem:[#allocation8 + $0x28] sm:$0xff] %v860
    %877 = vst [vmem:[#allocation8 + $0x30] sm:$0xff] %v865
    %878 = vst [vmem:[#allocation8 + $0x38] sm:$0xff] %v868
    // Predicated region
    $region58: #{tpu_custom_call.1} parent=1 // pred_check
      _
    $region59: #{tpu_custom_call.1} parent=1 // pred_check_branch
      %880 = sbr.rel (0) target = $region61
    $region60: #{tpu_custom_call.1} parent=1 // pred_region
      %s882 = ssub.s32 1024, 1024
      %883 = vsyncadd [#allocation4], %s882
      %s884 = sshll.u32 [#allocation8], 4
      %s885 = int_to_ptr.vmem [resolvable:$true] %s884
      %890 = dma.vmem_to_hbm [thread:$0]  %s885, 1024, %s11, [#allocation4], 128, 128, 8
    $region61: #{tpu_custom_call.1} parent=1 // pred_fallthru
      _
    // Predicated region
    $region62: #{tpu_custom_call.1} parent=1 // pred_check
      _
    $region63: #{tpu_custom_call.1} parent=1 // pred_check_branch
      %892 = sbr.rel (0) target = $region65
    $region64: #{tpu_custom_call.1} parent=1 // pred_region
      %893 = dma.done [#allocation4], 1024
    $region65: #{tpu_custom_call.1} parent=1 // pred_fallthru
      _
    %894 = vsyncpa [#allocation3], 1
    %895 = vsyncpa [#allocation6], 1
    %896 = vsyncpa [#allocation4], 1

</llo_original>
